<compile_context>
chip_gen: v6e
topology: v6e:2x2x1
jax: 0.10.0
libtpu: 0.0.40
codegen_flags: <defaults>
</compile_context>

<pallas_src>
import jax
import jax.numpy as jnp
from jax.experimental import pallas as pl
from jax.experimental.pallas import tpu as pltpu

# ---- configuration (consistent with the module) ----
BATCH = 1000                 # exercises both the batch grid and the padding path
TILE_B = 256                 # batch rows per grid step
IN_FEATURES = 16
INTERMEDIATE = 32
NUM_HIDDEN_LAYERS = 2        # kernel below is specialized for 2 shared layers
OUT_FEATURES = 8
NUM_EVENTS = 2
BN_EPS = 1e-5
LEAKY_SLOPE = 0.01           # nn.LeakyReLU default

EO = NUM_EVENTS * OUT_FEATURES   # fused head output width (16 real columns)
HIDDEN_PAD = 128                 # hidden dim / head output zero-padded to full lane width

# Row offsets inside the packed parameter slab (all multiples of 8 -> sublane aligned).
ROW_W0 = 0                               # rows   0..15 : BN-folded W0            (16 x 32 real)
ROW_B0 = ROW_W0 + IN_FEATURES            # rows  16..23 : BN-folded b0            (1 x 32 real)
ROW_W1 = ROW_B0 + 8                      # rows  24..151: BN-folded W1            (32 x 32 real)
ROW_B1 = ROW_W1 + HIDDEN_PAD             # rows 152..159: BN-folded b1            (1 x 32 real)
ROW_HW = ROW_B1 + 8                      # rows 160..287: fused head weights      (32 x 16 real)
ROW_HB = ROW_HW + HIDDEN_PAD             # rows 288..295: fused head bias + shift (1 x 16 real)
PACK_ROWS = ROW_HB + 8                   # 296 rows x 128 lanes (~148 KiB f32)


def comprisk_kernel(x_ref, p_ref, out_ref):
    # Load only the needed parameter rows straight from the ref (static slices).
    w0 = p_ref[ROW_W0:ROW_W0 + IN_FEATURES, :]      # (16, 128)
    b0 = p_ref[ROW_B0:ROW_B0 + 1, :]                # (1, 128)
    w1 = p_ref[ROW_W1:ROW_W1 + HIDDEN_PAD, :]       # (128, 128), rows >=32 are zero
    b1 = p_ref[ROW_B1:ROW_B1 + 1, :]                # (1, 128)
    hw = p_ref[ROW_HW:ROW_HW + HIDDEN_PAD, :]       # (128, 128), only [0:32, 0:16] nonzero
    hb = p_ref[ROW_HB:ROW_HB + 1, :]                # (1, 128)

    # shared layer 0 (BN folded into w0/b0); padded hidden columns stay exactly 0.
    h = jnp.dot(x_ref[...], w0, preferred_element_type=jnp.float32) + b0
    h = jnp.where(h >= 0, h, LEAKY_SLOPE * h)
    # shared layer 1 (BN folded into w1/b1)
    h = jnp.dot(h, w1, preferred_element_type=jnp.float32) + b1
    h = jnp.where(h >= 0, h, LEAKY_SLOPE * h)
    # fused event heads (per-event eval shift folded into hb); lane-dense (TILE_B, 128) store.
    out = jnp.dot(h, hw, preferred_element_type=jnp.float32) + hb
    out_ref[...] = out.astype(out_ref.dtype)


def comprisk_forward(x, packed_params, *, tile_b=TILE_B):
    B = x.shape[0]
    n_tiles = pl.cdiv(B, tile_b)
    b_pad = n_tiles * tile_b
    if b_pad != B:
        x = jnp.pad(x, ((0, b_pad - B), (0, 0)))

    flops = 2 * b_pad * (IN_FEATURES * HIDDEN_PAD + 2 * HIDDEN_PAD * HIDDEN_PAD)
    bytes_accessed = 4 * (b_pad * IN_FEATURES + PACK_ROWS * HIDDEN_PAD + b_pad * HIDDEN_PAD)

    out_flat = pl.pallas_call(
        comprisk_kernel,
        out_shape=jax.ShapeDtypeStruct((b_pad, HIDDEN_PAD), jnp.float32),
        grid=(n_tiles,),
        in_specs=[
            # x: one (tile_b, IN_FEATURES) block per grid step (streamed, double-buffered).
            pl.BlockSpec((tile_b, IN_FEATURES), lambda i: (i, 0)),
            # params: full slab, constant index_map -> fetched once, resident in VMEM.
            pl.BlockSpec((PACK_ROWS, HIDDEN_PAD), lambda i: (0, 0)),
        ],
        out_specs=pl.BlockSpec((tile_b, HIDDEN_PAD), lambda i: (i, 0)),
        compiler_params=pltpu.CompilerParams(
            dimension_semantics=("parallel",),       # shard batch tiles across TCs on v7x
        ),
        cost_estimate=pl.CostEstimate(
            flops=flops, transcendentals=0, bytes_accessed=bytes_accessed),
    )(x, packed_params)

    # Carve the real rows/columns back out; metadata-level reshape to (B, E, O).
    return out_flat[:B, :EO].reshape(B, NUM_EVENTS, OUT_FEATURES)


def pack_params(params):
    """Host-side BN/shift folding + packing into one contiguous (296, 128) f32 slab."""
    (w0, b0, g0, be0, m0, v0,
     w1, b1, g1, be1, m1, v1,
     hw, hb) = params

    # Fold BatchNorm (running stats, eval mode) into the Linear weights/biases.
    s0 = g0 * jax.lax.rsqrt(v0 + BN_EPS)
    w0f = w0 * s0
    b0f = (b0 - m0) * s0 + be0
    s1 = g1 * jax.lax.rsqrt(v1 + BN_EPS)
    w1f = w1 * s1
    b1f = (b1 - m1) * s1 + be1

    # Fuse the event heads: (E, H, O) -> (H, E*O); fold the eval-mode additive shift
    # 0.001*(e+1) into the bias via shift_e * sum_rows(hw[e]).
    hwf = jnp.transpose(hw, (1, 0, 2)).reshape(INTERMEDIATE, EO)          # (32, 16)
    shifts = 0.001 * (jnp.arange(NUM_EVENTS, dtype=jnp.float32) + 1.0)    # (E,)
    hbf = (hb[:, 0, :] + shifts[:, None] * hw.sum(axis=1)).reshape(1, EO)

    def block(a, rows):
        # Zero-pad each parameter block to (rows, 128) so every kernel slice is
        # sublane-aligned and lane-dense; the zeros contribute exactly 0 to every dot.
        return jnp.pad(a, ((0, rows - a.shape[0]), (0, HIDDEN_PAD - a.shape[1])))

    packed = jnp.concatenate([
        block(w0f, IN_FEATURES),      # rows   0..15
        block(b0f, 8),                # rows  16..23
        block(w1f, HIDDEN_PAD),       # rows  24..151
        block(b1f, 8),                # rows 152..159
        block(hwf, HIDDEN_PAD),       # rows 160..287
        block(hbf, 8),                # rows 288..295
    ], axis=0)
    assert packed.shape == (PACK_ROWS, HIDDEN_PAD)
    return packed


def init_params(key):
    """Deterministic synthetic init mirroring the module's parameter shapes.

    Linear weights stored as (in, out); biases/BN params as (1, features);
    head weights stacked (E, H, O), head biases (E, 1, O).
    """
    ks = jax.random.split(key, 8)

    # shared layer 0: Linear(IN_FEATURES, INTERMEDIATE) + BatchNorm1d(INTERMEDIATE)
    w0 = jax.random.normal(ks[0], (IN_FEATURES, INTERMEDIATE), jnp.float32) * 0.1
    b0 = jax.random.normal(ks[1], (1, INTERMEDIATE), jnp.float32) * 0.05
    g0 = jnp.ones((1, INTERMEDIATE), jnp.float32) * 1.1
    be0 = jnp.full((1, INTERMEDIATE), 0.02, jnp.float32)
    m0 = jax.random.normal(ks[2], (1, INTERMEDIATE), jnp.float32) * 0.1
    v0 = jnp.ones((1, INTERMEDIATE), jnp.float32) * 0.9

    # shared layer 1: Linear(INTERMEDIATE, INTERMEDIATE) + BatchNorm1d(INTERMEDIATE)
    w1 = jax.random.normal(ks[3], (INTERMEDIATE, INTERMEDIATE), jnp.float32) * 0.1
    b1 = jax.random.normal(ks[4], (1, INTERMEDIATE), jnp.float32) * 0.05
    g1 = jnp.ones((1, INTERMEDIATE), jnp.float32) * 0.95
    be1 = jnp.full((1, INTERMEDIATE), -0.01, jnp.float32)
    m1 = jax.random.normal(ks[5], (1, INTERMEDIATE), jnp.float32) * 0.1
    v1 = jnp.ones((1, INTERMEDIATE), jnp.float32) * 1.05

    # event heads: per-event mean/std + fixed bias pattern (mirrors __init__ intent;
    # exact torch RNG noise is not reproduced — synthetic deterministic init).
    head_ws, head_bs = [], []
    hkeys = jax.random.split(ks[6], NUM_EVENTS)
    for i in range(NUM_EVENTS):
        mean_i = -0.1 + i * 0.1
        std_i = 0.2 + i * 0.05
        w = mean_i + std_i * jax.random.normal(
            hkeys[i], (INTERMEDIATE, OUT_FEATURES), jnp.float32)
        base = (-1.0 - i * 0.5) if i == 0 else (-0.5 + i * 0.5)
        pos = jnp.linspace(-0.5, 0.5, OUT_FEATURES, dtype=jnp.float32) * (1.0 + i * 0.5)
        b = (base + pos).reshape(1, OUT_FEATURES)
        head_ws.append(w)
        head_bs.append(b)
    hw = jnp.stack(head_ws, axis=0)          # (E, H, O)
    hb = jnp.stack(head_bs, axis=0)          # (E, 1, O)

    return (w0, b0, g0, be0, m0, v0, w1, b1, g1, be1, m1, v1, hw, hb)


def reference_forward(x, params):
    """Pure-JAX reference of the original (unfused) eval-mode forward."""
    (w0, b0, g0, be0, m0, v0,
     w1, b1, g1, be1, m1, v1,
     hw, hb) = params
    h = x @ w0 + b0
    h = (h - m0) * jax.lax.rsqrt(v0 + BN_EPS) * g0 + be0
    h = jnp.where(h >= 0, h, LEAKY_SLOPE * h)
    h = h @ w1 + b1
    h = (h - m1) * jax.lax.rsqrt(v1 + BN_EPS) * g1 + be1
    h = jnp.where(h >= 0, h, LEAKY_SLOPE * h)
    outs = []
    for i in range(NUM_EVENTS):
        ev = (h + 0.001 * (i + 1)) @ hw[i] + hb[i]
        outs.append(ev)
    return jnp.stack(outs, axis=1)


if __name__ == "__main__":
    key = jax.random.PRNGKey(0)
    kx, kp = jax.random.split(key)
    x = jax.random.normal(kx, (BATCH, IN_FEATURES), jnp.float32)
    raw_params = init_params(kp)
    packed = pack_params(raw_params)

    out = comprisk_forward(x, packed)
    out = jax.block_until_ready(out)

    ref = reference_forward(x, raw_params)
    assert out.shape == (BATCH, NUM_EVENTS, OUT_FEATURES)
    # 1e-4 tolerance: BN / shift folding re-associates float ops relative to the
    # module's op order; real bugs would be orders of magnitude larger.
    assert jnp.allclose(out, ref, atol=1e-4, rtol=1e-4), "mismatch vs reference"
    print("KERNEL_OK")
</pallas_src>

<mosaic_0001>
module attributes {stable_mosaic.version = 11 : i64} {
  func.func @comprisk_kernel(%arg0: i32, %arg1: memref<256x16xf32, #tpu.memory_space<vmem>>, %arg2: memref<296x128xf32, #tpu.memory_space<vmem>>, %arg3: memref<256x128xf32, #tpu.memory_space<vmem>>) attributes {dimension_semantics = [#tpu.dimension_semantics<parallel>], iteration_bounds = array<i64: 4>, scalar_prefetch = 0 : i64, scratch_operands = 0 : i64, tpu.core_type = #tpu.core_type<tc>, window_params = [{transform_indices = @transform_0, window_bounds = array<i64: 256, 16>}, {pipeline_mode = #tpu.pipeline_mode<synchronous>, transform_indices = @transform_1, window_bounds = array<i64: 296, 128>}, {transform_indices = @transform_2, window_bounds = array<i64: 256, 128>}]} {
    %c0 = arith.constant 0 : index
    %c0_0 = arith.constant 0 : index
    %0 = vector.load %arg2[%c0, %c0_0] : memref<296x128xf32, #tpu.memory_space<vmem>>, vector<16x128xf32>
    %c16 = arith.constant 16 : index
    %c0_1 = arith.constant 0 : index
    %1 = vector.load %arg2[%c16, %c0_1] : memref<296x128xf32, #tpu.memory_space<vmem>>, vector<1x128xf32>
    %c24 = arith.constant 24 : index
    %c0_2 = arith.constant 0 : index
    %2 = vector.load %arg2[%c24, %c0_2] : memref<296x128xf32, #tpu.memory_space<vmem>>, vector<128x128xf32>
    %c152 = arith.constant 152 : index
    %c0_3 = arith.constant 0 : index
    %3 = vector.load %arg2[%c152, %c0_3] : memref<296x128xf32, #tpu.memory_space<vmem>>, vector<1x128xf32>
    %c160 = arith.constant 160 : index
    %c0_4 = arith.constant 0 : index
    %4 = vector.load %arg2[%c160, %c0_4] : memref<296x128xf32, #tpu.memory_space<vmem>>, vector<128x128xf32>
    %c288 = arith.constant 288 : index
    %c0_5 = arith.constant 0 : index
    %5 = vector.load %arg2[%c288, %c0_5] : memref<296x128xf32, #tpu.memory_space<vmem>>, vector<1x128xf32>
    %c0_6 = arith.constant 0 : index
    %c0_7 = arith.constant 0 : index
    %6 = vector.load %arg1[%c0_6, %c0_7] : memref<256x16xf32, #tpu.memory_space<vmem>>, vector<256x16xf32>
    %cst = arith.constant dense<0.000000e+00> : vector<256x128xf32>
    %7 = tpu.matmul %6, %0, %cst {dimension_numbers = #tpu.dot_dimension_numbers<[1], [0], [0], [1], [0, 0, 1, 1], [], []>} : vector<256x16xf32>, vector<16x128xf32>, vector<256x128xf32> -> vector<256x128xf32>
    %8 = vector.broadcast %1 : vector<1x128xf32> to vector<256x128xf32>
    %9 = arith.addf %7, %8 : vector<256x128xf32>
    %cst_8 = arith.constant 0.000000e+00 : f32
    %10 = vector.broadcast %cst_8 : f32 to vector<256x128xf32>
    %11 = arith.cmpf oge, %9, %10 : vector<256x128xf32>
    %cst_9 = arith.constant 0.00999999977 : f32
    %12 = vector.broadcast %cst_9 : f32 to vector<256x128xf32>
    %13 = arith.mulf %12, %9 : vector<256x128xf32>
    %14 = arith.select %11, %9, %13 : vector<256x128xi1>, vector<256x128xf32>
    %cst_10 = arith.constant dense<0.000000e+00> : vector<256x128xf32>
    %15 = tpu.matmul %14, %2, %cst_10 {dimension_numbers = #tpu.dot_dimension_numbers<[1], [0], [0], [1], [0, 0, 1, 1], [], []>} : vector<256x128xf32>, vector<128x128xf32>, vector<256x128xf32> -> vector<256x128xf32>
    %16 = vector.broadcast %3 : vector<1x128xf32> to vector<256x128xf32>
    %17 = arith.addf %15, %16 : vector<256x128xf32>
    %cst_11 = arith.constant 0.000000e+00 : f32
    %18 = vector.broadcast %cst_11 : f32 to vector<256x128xf32>
    %19 = arith.cmpf oge, %17, %18 : vector<256x128xf32>
    %cst_12 = arith.constant 0.00999999977 : f32
    %20 = vector.broadcast %cst_12 : f32 to vector<256x128xf32>
    %21 = arith.mulf %20, %17 : vector<256x128xf32>
    %22 = arith.select %19, %17, %21 : vector<256x128xi1>, vector<256x128xf32>
    %cst_13 = arith.constant dense<0.000000e+00> : vector<256x128xf32>
    %23 = tpu.matmul %22, %4, %cst_13 {dimension_numbers = #tpu.dot_dimension_numbers<[1], [0], [0], [1], [0, 0, 1, 1], [], []>} : vector<256x128xf32>, vector<128x128xf32>, vector<256x128xf32> -> vector<256x128xf32>
    %24 = vector.broadcast %5 : vector<1x128xf32> to vector<256x128xf32>
    %25 = arith.addf %23, %24 : vector<256x128xf32>
    %c0_14 = arith.constant 0 : index
    %c0_15 = arith.constant 0 : index
    %26 = vector.load %arg3[%c0_14, %c0_15] : memref<256x128xf32, #tpu.memory_space<vmem>>, vector<256x128xf32>
    tpu.vector_store %arg3[%c0_14, %c0_15], %25 {strides = array<i32>} : memref<256x128xf32, #tpu.memory_space<vmem>>, vector<256x128xf32>,
    return
  }
  func.func @transform_0(%arg0: i32) -> (i32, i32) {
    %c0_i32 = arith.constant 0 : i32
    %c0_i32_0 = arith.constant 0 : i32
    return %arg0, %c0_i32 : i32, i32
  }
  func.func @transform_1(%arg0: i32) -> (i32, i32) {
    %c0_i32 = arith.constant 0 : i32
    %c0_i32_0 = arith.constant 0 : i32
    %c0_i32_1 = arith.constant 0 : i32
    return %c0_i32, %c0_i32_0 : i32, i32
  }
  func.func @transform_2(%arg0: i32) -> (i32, i32) {
    %c0_i32 = arith.constant 0 : i32
    %c0_i32_0 = arith.constant 0 : i32
    return %arg0, %c0_i32 : i32, i32
  }
}

</mosaic_0001>

<llo_original>
// kernel: tpu_custom_call.1
$region0: #{tpu_custom_call.1}
  #allocation0 [shape = 'u32[]', space=smem, size = 0x4, offset = 0x4, fixed_abs, tag = 'smem constant byte address 0x4 - core index']
  #allocation1 [shape = 'u32[144,128]{1,0:T(1,128)}', space=vmem, size = 0x12000, scoped, tag = 'internal scratch']
  %s0 = inlined_call_operand.vmem [shape: f32[1024,16], index: 0, kind: input, shape index: {}]
  %s1 = inlined_call_operand.vmem [shape: f32[296,128], index: 1, kind: input, shape index: {}]
  %s2 = inlined_call_operand.hbm [shape: f32[1024,128], index: 2, kind: output, shape index: {}]
  %s3 = sld [smem:[#allocation0]]
  $region41: #{tpu_custom_call.1} parent=0
    _
  %s5 = ssub.s32 1, %s3
  %s6 = scalar_select 0, %s5, %s3
  $region1: #{tpu_custom_call.1} parent=0
    #allocation2 [shape = 'u8[262144]{0}', space=vmem, size = 0x40000, scoped, tag = 'output window, operand 0']
    #allocation3 [shape = 's32[2]{0}', space=sflag, size = 0x8, scoped, tag = 'scoped memory for tpu_custom_call.1']
    %7 = vsyncpa [#allocation3], 0
    %s8 = scalar_lea.sflag [#allocation3], 1
    %9 = vsyncpa %s8, 0
    loop: start=0, step=1, limit=6
    $region2: #{tpu_custom_call.1} parent=1 // loop_pre_header
      _
    $region3: #{tpu_custom_call.1} parent=1 // loop_header
      %s11 = sphi 0, %s15
      %p12 = scmp.ge.s32.totalorder %s11, 6
      %s21 = sphi 0, %s23
      %s24 = sphi 0, %s21
      %s25 = sphi 0, %s24
      %s41 = sphi 0, %s25
      %s45 = sphi 0, %s45
      %s47 = sphi 0, %s45
      %s48 = sphi 0, %s47
      %s62 = sphi 0, %s48
      %s68 = sphi 0, %s70
      %s71 = sphi 0, %s68
      %s72 = sphi 0, %s71
      %s88 = sphi 0, %s72
    $region4: #{tpu_custom_call.1} parent=1 // loop_header_branch
      %14 = sbr.rel (%p12) target = $region8
    $region5: #{tpu_custom_call.1} parent=1 // loop_body
      %s16 = ssub.s32 %s11, 1
      %s17 = ssub.s32 %s11, 2
      %s18 = sadd.s32 %s11, 1
      %s19 = ssub.s32 %s11, %s18
      %p20 = scmp.eq.s32.totalorder %s19, 0
      %s22 = sadd.s32 %s21, 1
      %s23 = scalar_select %p20, %s21, %s22
      %p26 = pneg %p20
      %p27 = scmp.eq.s32.totalorder %s11, 3
      %p28 = por %p26, %p27
      %p29 = scmp.ne.s32.totalorder %s21, %s24
      %p30 = scmp.eq.s32.totalorder %s11, 0
      %p31 = por %p29, %p30
      %p32 = scmp.ne.s32.totalorder %s21, %s24
      %p33 = scmp.eq.s32.totalorder %s16, 3
      %p34 = por %p32, %p33
      %p35 = scmp.ne.s32.totalorder %s24, %s25
      %p36 = scmp.eq.s32.totalorder %s16, 0
      %p37 = por %p35, %p36
      %p38 = scmp.ne.s32.totalorder %s24, %s25
      %p39 = scmp.eq.s32.totalorder %s17, 3
      %p40 = por %p38, %p39
      %p42 = scmp.ne.s32.totalorder %s25, %s41
      %p43 = scmp.eq.s32.totalorder %s17, 0
      %p44 = por %p42, %p43
      %s46 = sadd.s32 %s45, 1
      %p49 = scmp.eq.s32.totalorder %s11, 3
      %p50 = scmp.ne.s32.totalorder %s45, %s47
      %p51 = scmp.eq.s32.totalorder %s11, 0
      %p52 = por %p50, %p51
      %p53 = scmp.ne.s32.totalorder %s45, %s47
      %p54 = scmp.eq.s32.totalorder %s16, 3
      %p55 = por %p53, %p54
      %p56 = scmp.ne.s32.totalorder %s47, %s48
      %p57 = scmp.eq.s32.totalorder %s16, 0
      %p58 = por %p56, %p57
      %p59 = scmp.ne.s32.totalorder %s47, %s48
      %p60 = scmp.eq.s32.totalorder %s17, 3
      %p61 = por %p59, %p60
      %p63 = scmp.ne.s32.totalorder %s48, %s62
      %p64 = scmp.eq.s32.totalorder %s17, 0
      %p65 = por %p63, %p64
      %s66 = ssub.s32 %s11, %s18
      %p67 = scmp.eq.s32.totalorder %s66, 0
      %s69 = sadd.s32 %s68, 1
      %s70 = scalar_select %p67, %s68, %s69
      %p73 = pneg %p67
      %p74 = scmp.eq.s32.totalorder %s11, 3
      %p75 = por %p73, %p74
      %p76 = scmp.ne.s32.totalorder %s68, %s71
      %p77 = scmp.eq.s32.totalorder %s11, 0
      %p78 = por %p76, %p77
      %p79 = scmp.ne.s32.totalorder %s68, %s71
      %p80 = scmp.eq.s32.totalorder %s16, 3
      %p81 = por %p79, %p80
      %p82 = scmp.ne.s32.totalorder %s71, %s72
      %p83 = scmp.eq.s32.totalorder %s16, 0
      %p84 = por %p82, %p83
      %p85 = scmp.ne.s32.totalorder %s71, %s72
      %p86 = scmp.eq.s32.totalorder %s17, 3
      %p87 = por %p85, %p86
      %p89 = scmp.ne.s32.totalorder %s72, %s88
      %p90 = scmp.eq.s32.totalorder %s17, 0
      %p91 = por %p89, %p90
      %p92 = scmp.le.s32.totalorder 1, %s11
      %p93 = scmp.lt.s32.totalorder %s11, 5
      %p94 = pnand %p92, %p93
      %p95 = pneg %p94
      // Predicated region
      $region9: #{tpu_custom_call.1} parent=5 // pred_check
        _
      $region10: #{tpu_custom_call.1} parent=5 // pred_check_branch
        %97 = sbr.rel (%p94) target = $region12
      $region11: #{tpu_custom_call.1} parent=5 // pred_region
        %s98 = ssub.s32 %s11, 1
        // Predicated region
        $region13: #{tpu_custom_call.1} parent=11 // pred_check
          %p99 = pneg %p58
        $region14: #{tpu_custom_call.1} parent=11 // pred_check_branch
          %101 = sbr.rel (%p99) target = $region16
        $region15: #{tpu_custom_call.1} parent=11 // pred_region
          _
        $region16: #{tpu_custom_call.1} parent=11 // pred_fallthru
          _
      $region12: #{tpu_custom_call.1} parent=5 // pred_fallthru
        _
      %p102 = scmp.lt.s32.totalorder %s11, 4
      // Predicated region
      $region17: #{tpu_custom_call.1} parent=5 // pred_check
        %p103 = pneg %p102
      $region18: #{tpu_custom_call.1} parent=5 // pred_check_branch
        %105 = sbr.rel (%p103) target = $region20
      $region19: #{tpu_custom_call.1} parent=5 // pred_region
        // Predicated region
        $region21: #{tpu_custom_call.1} parent=19 // pred_check
          %p106 = pneg %p31
        $region22: #{tpu_custom_call.1} parent=19 // pred_check_branch
          %108 = sbr.rel (%p106) target = $region24
        $region23: #{tpu_custom_call.1} parent=19 // pred_region
          %s109 = smul.u32 32, %s11
          %p110 = scmp.lt.s32.totalorder %s109, 127
          %s111 = scalar_select %p110, %s109, 127
          %s112 = smul.addr %s111, 8
          %s113 = scalar_lea.vmem %s0, %s112
          %s114 = smul.u32 32, %s11
        $region24: #{tpu_custom_call.1} parent=19 // pred_fallthru
          _
      $region20: #{tpu_custom_call.1} parent=5 // pred_fallthru
        _
      %p115 = scmp.le.s32.totalorder 1, %s11
      %p116 = scmp.lt.s32.totalorder %s11, 5
      %p117 = pnand %p115, %p116
      %p118 = pneg %p117
      // Predicated region
      $region25: #{tpu_custom_call.1} parent=5 // pred_check
        _
      $region26: #{tpu_custom_call.1} parent=5 // pred_check_branch
        %120 = sbr.rel (%p117) target = $region28
      $region27: #{tpu_custom_call.1} parent=5 // pred_region
        %s121 = ssub.s32 %s11, 1
        %s122 = smul.u32 32, %s16
        %p123 = scmp.lt.s32.totalorder %s122, 127
        %s124 = scalar_select %p123, %s122, 127
        %s125 = smul.addr %s124, 8
        %s126 = scalar_lea.vmem %s0, %s125
        %p127 = pneg %p37
        %p128 = pneg %p34
        %p129 = pneg %p58
        %p130 = pneg %p55
        %p131 = pneg %p84
        %p132 = pneg %p81
        %s133 = sand.u32 %s71, 1
        %s134 = scalar_lea.sflag [#allocation3], %s133
        %s135 = sand.u32 %s71, 1
        %s136 = smul.addr %s135, 256
        %s137 = scalar_lea.vmem [#allocation2], %s136
        %s138 = smul.u32 32, %s16
        %p139 = scmp.lt.s32.totalorder %s138, 127
        %s140 = scalar_select %p139, %s138, 127
        %s141 = smul.addr %s140, 8
        %s142 = scalar_lea.vmem %s0, %s141
        %s143 = smul.u32 32, %s16
        %s144 = smul.u32 32, %s16
        %v145 = vld [vmem:[%s1] sm:$0xff]
        %v146 = vld [vmem:[%s1 + $0x8] sm:$0xff]
        %v147 = vld [vmem:[%s1 + $0x10] sm:$0x1]
        %v148 = vld [vmem:[%s1 + $0x18] sm:$0xff]
        %v149 = vld [vmem:[%s1 + $0x20] sm:$0xff]
        %v150 = vld [vmem:[%s1 + $0x28] sm:$0xff]
        %v151 = vld [vmem:[%s1 + $0x30] sm:$0xff]
        %v152 = vld [vmem:[%s1 + $0x38] sm:$0xff]
        %v153 = vld [vmem:[%s1 + $0x40] sm:$0xff]
        %v154 = vld [vmem:[%s1 + $0x48] sm:$0xff]
        %v155 = vld [vmem:[%s1 + $0x50] sm:$0xff]
        %v156 = vld [vmem:[%s1 + $0x58] sm:$0xff]
        %v157 = vld [vmem:[%s1 + $0x60] sm:$0xff]
        %v158 = vld [vmem:[%s1 + $0x68] sm:$0xff]
        %v159 = vld [vmem:[%s1 + $0x70] sm:$0xff]
        %v160 = vld [vmem:[%s1 + $0x78] sm:$0xff]
        %v161 = vld [vmem:[%s1 + $0x80] sm:$0xff]
        %v162 = vld [vmem:[%s1 + $0x88] sm:$0xff]
        %v163 = vld [vmem:[%s1 + $0x90] sm:$0xff]
        %v164 = vld [vmem:[%s1 + $0x98] sm:$0x1]
        %v165 = vld [vmem:[%s1 + $0xa0] sm:$0xff]
        %v166 = vld [vmem:[%s1 + $0xa8] sm:$0xff]
        %v167 = vld [vmem:[%s1 + $0xb0] sm:$0xff]
        %v168 = vld [vmem:[%s1 + $0xb8] sm:$0xff]
        %v169 = vld [vmem:[%s1 + $0xc0] sm:$0xff]
        %v170 = vld [vmem:[%s1 + $0xc8] sm:$0xff]
        %v171 = vld [vmem:[%s1 + $0xd0] sm:$0xff]
        %v172 = vld [vmem:[%s1 + $0xd8] sm:$0xff]
        %v173 = vld [vmem:[%s1 + $0xe0] sm:$0xff]
        %v174 = vld [vmem:[%s1 + $0xe8] sm:$0xff]
        %v175 = vld [vmem:[%s1 + $0xf0] sm:$0xff]
        %v176 = vld [vmem:[%s1 + $0xf8] sm:$0xff]
        %v177 = vld [vmem:[%s1 + $0x100] sm:$0xff]
        %v178 = vld [vmem:[%s1 + $0x108] sm:$0xff]
        %v179 = vld [vmem:[%s1 + $0x110] sm:$0xff]
        %v180 = vld [vmem:[%s1 + $0x118] sm:$0xff]
        %v181 = vld [vmem:[%s1 + $0x120] sm:$0x1]
        %v182 = vld [vmem:[%s142] sm:$0xff]
        %v183 = vld [vmem:[%s142 + $0x8] sm:$0xff]
        %v184 = vld [vmem:[%s142 + $0x10] sm:$0xff]
        %v185 = vld [vmem:[%s142 + $0x18] sm:$0xff]
        %v186 = vld [vmem:[%s142 + $0x20] sm:$0xff]
        %v187 = vld [vmem:[%s142 + $0x28] sm:$0xff]
        %v188 = vld [vmem:[%s142 + $0x30] sm:$0xff]
        %v189 = vld [vmem:[%s142 + $0x38] sm:$0xff]
        %v190 = vld [vmem:[%s142 + $0x40] sm:$0xff]
        %v191 = vld [vmem:[%s142 + $0x48] sm:$0xff]
        %v192 = vld [vmem:[%s142 + $0x50] sm:$0xff]
        %v193 = vld [vmem:[%s142 + $0x58] sm:$0xff]
        %v194 = vld [vmem:[%s142 + $0x60] sm:$0xff]
        %v195 = vld [vmem:[%s142 + $0x68] sm:$0xff]
        %v196 = vld [vmem:[%s142 + $0x70] sm:$0xff]
        %v197 = vld [vmem:[%s142 + $0x78] sm:$0xff]
        %v198 = vld [vmem:[%s142 + $0x80] sm:$0xff]
        %v199 = vld [vmem:[%s142 + $0x88] sm:$0xff]
        %v200 = vld [vmem:[%s142 + $0x90] sm:$0xff]
        %v201 = vld [vmem:[%s142 + $0x98] sm:$0xff]
        %v202 = vld [vmem:[%s142 + $0xa0] sm:$0xff]
        %v203 = vld [vmem:[%s142 + $0xa8] sm:$0xff]
        %v204 = vld [vmem:[%s142 + $0xb0] sm:$0xff]
        %v205 = vld [vmem:[%s142 + $0xb8] sm:$0xff]
        %v206 = vld [vmem:[%s142 + $0xc0] sm:$0xff]
        %v207 = vld [vmem:[%s142 + $0xc8] sm:$0xff]
        %v208 = vld [vmem:[%s142 + $0xd0] sm:$0xff]
        %v209 = vld [vmem:[%s142 + $0xd8] sm:$0xff]
        %v210 = vld [vmem:[%s142 + $0xe0] sm:$0xff]
        %v211 = vld [vmem:[%s142 + $0xe8] sm:$0xff]
        %v212 = vld [vmem:[%s142 + $0xf0] sm:$0xff]
        %v213 = vld [vmem:[%s142 + $0xf8] sm:$0xff]
        %v214 = vlaneseq
        %v215 = vshrl.u32 %v214, 7
        %v216 = vsub.s32 0, %v215
        %v217 = vrot.slane %v147, %v216
        %vm218 = vcmask 130048
        %v220 = vsel %vm218, %v182, 0
        %v223 = vsel %vm218, %v183, 0
        %v226 = vsel %vm218, %v184, 0
        %v229 = vsel %vm218, %v185, 0
        %v232 = vsel %vm218, %v186, 0
        %v235 = vsel %vm218, %v187, 0
        %v238 = vsel %vm218, %v188, 0
        %v241 = vsel %vm218, %v189, 0
        %v244 = vsel %vm218, %v190, 0
        %v247 = vsel %vm218, %v191, 0
        %v250 = vsel %vm218, %v192, 0
        %v253 = vsel %vm218, %v193, 0
        %v256 = vsel %vm218, %v194, 0
        %v259 = vsel %vm218, %v195, 0
        %v262 = vsel %vm218, %v196, 0
        %v265 = vsel %vm218, %v197, 0
        %v268 = vsel %vm218, %v198, 0
        %v271 = vsel %vm218, %v199, 0
        %v274 = vsel %vm218, %v200, 0
        %v277 = vsel %vm218, %v201, 0
        %v280 = vsel %vm218, %v202, 0
        %v283 = vsel %vm218, %v203, 0
        %v286 = vsel %vm218, %v204, 0
        %v289 = vsel %vm218, %v205, 0
        %v292 = vsel %vm218, %v206, 0
        %v295 = vsel %vm218, %v207, 0
        %v298 = vsel %vm218, %v208, 0
        %v301 = vsel %vm218, %v209, 0
        %v304 = vsel %vm218, %v210, 0
        %v307 = vsel %vm218, %v211, 0
        %v310 = vsel %vm218, %v212, 0
        %v313 = vsel %vm218, %v213, 0
        %315 = vmatprep.subr.mxu0 0.0
        %316 = vmatpush1.msra.mxu0 0.0
        %317 = vmatprep.subr.mxu0 0.0
        %318 = vmatpush1.msra.mxu0 0.0
        %319 = vmatprep.subr.mxu0 0.0
        %320 = vmatpush1.msra.mxu0 0.0
        %321 = vmatprep.subr.mxu0 0.0
        %322 = vmatpush1.msra.mxu0 0.0
        %323 = vmatprep.subr.mxu0 0.0
        %324 = vmatpush1.msra.mxu0 0.0
        %325 = vmatprep.subr.mxu0 0.0
        %326 = vmatpush1.msra.mxu0 0.0
        %327 = vmatprep.subr.mxu0 0.0
        %328 = vmatpush1.msra.mxu0 0.0
        %329 = vmatprep.subr.mxu0 0.0
        %330 = vmatpush1.msra.mxu0 0.0
        %331 = vmatprep.subr.mxu0 0.0
        %332 = vmatpush1.msra.mxu0 0.0
        %333 = vmatprep.subr.mxu0 0.0
        %334 = vmatpush1.msra.mxu0 0.0
        %335 = vmatprep.subr.mxu0 0.0
        %336 = vmatpush1.msra.mxu0 0.0
        %337 = vmatprep.subr.mxu0 0.0
        %338 = vmatpush1.msra.mxu0 0.0
        %339 = vmatprep.subr.mxu0 0.0
        %340 = vmatpush1.msra.mxu0 0.0
        %341 = vmatprep.subr.mxu0 0.0
        %342 = vmatpush1.msra.mxu0 0.0
        %343 = vmatprep.subr.mxu0 0.0
        %344 = vmatpush1.msra.mxu0 %v146
        %345 = vmatprep.subr.mxu0 0.0
        %346 = vmatpush1.msra.mxu0 %v145
        %347 = vmatprep.subr.mxu0 0.0
        %348 = vmatpush2.msra.mxu0 0.0
        %349 = vmatprep.subr.mxu0 0.0
        %350 = vmatpush2.msra.mxu0 0.0
        %351 = vmatprep.subr.mxu0 0.0
        %352 = vmatpush2.msra.mxu0 0.0
        %353 = vmatprep.subr.mxu0 0.0
        %354 = vmatpush2.msra.mxu0 0.0
        %355 = vmatprep.subr.mxu0 0.0
        %356 = vmatpush2.msra.mxu0 0.0
        %357 = vmatprep.subr.mxu0 0.0
        %358 = vmatpush2.msra.mxu0 0.0
        %359 = vmatprep.subr.mxu0 0.0
        %360 = vmatpush2.msra.mxu0 0.0
        %361 = vmatprep.subr.mxu0 0.0
        %362 = vmatpush2.msra.mxu0 0.0
        %363 = vmatprep.subr.mxu0 0.0
        %364 = vmatpush2.msra.mxu0 0.0
        %365 = vmatprep.subr.mxu0 0.0
        %366 = vmatpush2.msra.mxu0 0.0
        %367 = vmatprep.subr.mxu0 0.0
        %368 = vmatpush2.msra.mxu0 0.0
        %369 = vmatprep.subr.mxu0 0.0
        %370 = vmatpush2.msra.mxu0 0.0
        %371 = vmatprep.subr.mxu0 0.0
        %372 = vmatpush2.msra.mxu0 0.0
        %373 = vmatprep.subr.mxu0 0.0
        %374 = vmatpush2.msra.mxu0 0.0
        %375 = vmatprep.subr.mxu0 0.0
        %376 = vmatpush2.msra.mxu0 0.0
        %377 = vmatprep.subr.mxu0 0.0
        %378 = vmatpush2.msra.mxu0 0.0
        %379 = vmatprep.mubr.f32.mxu0 0.0
        %380 = vmatmul.mubr.f32.gmra.mxu0 %v220
        %v381 = vpop.f32.mrf.mxu0
        %v382 = vadd.f32 %v217, %v381
        %v383 = vpop.f32.mrf.mxu0
        %384 = vmatprep.mubr.f32.mxu0 0.0
        %385 = vmatmul.mubr.f32.gmra.mxu0 %v223
        %v386 = vpop.f32.mrf.mxu0
        %v387 = vadd.f32 %v217, %v386
        %v388 = vpop.f32.mrf.mxu0
        %389 = vmatprep.mubr.f32.mxu0 0.0
        %390 = vmatmul.mubr.f32.gmra.mxu0 %v226
        %v391 = vpop.f32.mrf.mxu0
        %v392 = vadd.f32 %v217, %v391
        %v393 = vpop.f32.mrf.mxu0
        %394 = vmatprep.mubr.f32.mxu0 0.0
        %395 = vmatmul.mubr.f32.gmra.mxu0 %v229
        %v396 = vpop.f32.mrf.mxu0
        %v397 = vadd.f32 %v217, %v396
        %v398 = vpop.f32.mrf.mxu0
        %399 = vmatprep.mubr.f32.mxu0 0.0
        %400 = vmatmul.mubr.f32.gmra.mxu0 %v232
        %v401 = vpop.f32.mrf.mxu0
        %v402 = vadd.f32 %v217, %v401
        %v403 = vpop.f32.mrf.mxu0
        %404 = vmatprep.mubr.f32.mxu0 0.0
        %405 = vmatmul.mubr.f32.gmra.mxu0 %v235
        %v406 = vpop.f32.mrf.mxu0
        %v407 = vadd.f32 %v217, %v406
        %v408 = vpop.f32.mrf.mxu0
        %409 = vmatprep.mubr.f32.mxu0 0.0
        %410 = vmatmul.mubr.f32.gmra.mxu0 %v238
        %v411 = vpop.f32.mrf.mxu0
        %v412 = vadd.f32 %v217, %v411
        %v413 = vpop.f32.mrf.mxu0
        %414 = vmatprep.mubr.f32.mxu0 0.0
        %415 = vmatmul.mubr.f32.gmra.mxu0 %v241
        %v416 = vpop.f32.mrf.mxu0
        %v417 = vadd.f32 %v217, %v416
        %v418 = vpop.f32.mrf.mxu0
        %419 = vmatprep.mubr.f32.mxu0 0.0
        %420 = vmatmul.mubr.f32.gmra.mxu0 %v244
        %v421 = vpop.f32.mrf.mxu0
        %v422 = vadd.f32 %v217, %v421
        %v423 = vpop.f32.mrf.mxu0
        %424 = vmatprep.mubr.f32.mxu0 0.0
        %425 = vmatmul.mubr.f32.gmra.mxu0 %v247
        %v426 = vpop.f32.mrf.mxu0
        %v427 = vadd.f32 %v217, %v426
        %v428 = vpop.f32.mrf.mxu0
        %429 = vmatprep.mubr.f32.mxu0 0.0
        %430 = vmatmul.mubr.f32.gmra.mxu0 %v250
        %v431 = vpop.f32.mrf.mxu0
        %v432 = vadd.f32 %v217, %v431
        %v433 = vpop.f32.mrf.mxu0
        %434 = vmatprep.mubr.f32.mxu0 0.0
        %435 = vmatmul.mubr.f32.gmra.mxu0 %v253
        %v436 = vpop.f32.mrf.mxu0
        %v437 = vadd.f32 %v217, %v436
        %v438 = vpop.f32.mrf.mxu0
        %439 = vmatprep.mubr.f32.mxu0 0.0
        %440 = vmatmul.mubr.f32.gmra.mxu0 %v256
        %v441 = vpop.f32.mrf.mxu0
        %v442 = vadd.f32 %v217, %v441
        %v443 = vpop.f32.mrf.mxu0
        %444 = vmatprep.mubr.f32.mxu0 0.0
        %445 = vmatmul.mubr.f32.gmra.mxu0 %v259
        %v446 = vpop.f32.mrf.mxu0
        %v447 = vadd.f32 %v217, %v446
        %v448 = vpop.f32.mrf.mxu0
        %449 = vmatprep.mubr.f32.mxu0 0.0
        %450 = vmatmul.mubr.f32.gmra.mxu0 %v262
        %v451 = vpop.f32.mrf.mxu0
        %v452 = vadd.f32 %v217, %v451
        %v453 = vpop.f32.mrf.mxu0
        %454 = vmatprep.mubr.f32.mxu0 0.0
        %455 = vmatmul.mubr.f32.gmra.mxu0 %v265
        %v456 = vpop.f32.mrf.mxu0
        %v457 = vadd.f32 %v217, %v456
        %v458 = vpop.f32.mrf.mxu0
        %459 = vmatprep.mubr.f32.mxu0 0.0
        %460 = vmatmul.mubr.f32.gmra.mxu0 %v268
        %v461 = vpop.f32.mrf.mxu0
        %v462 = vadd.f32 %v217, %v461
        %v463 = vpop.f32.mrf.mxu0
        %464 = vmatprep.mubr.f32.mxu0 0.0
        %465 = vmatmul.mubr.f32.gmra.mxu0 %v271
        %v466 = vpop.f32.mrf.mxu0
        %v467 = vadd.f32 %v217, %v466
        %v468 = vpop.f32.mrf.mxu0
        %469 = vmatprep.mubr.f32.mxu0 0.0
        %470 = vmatmul.mubr.f32.gmra.mxu0 %v274
        %v471 = vpop.f32.mrf.mxu0
        %v472 = vadd.f32 %v217, %v471
        %v473 = vpop.f32.mrf.mxu0
        %474 = vmatprep.mubr.f32.mxu0 0.0
        %475 = vmatmul.mubr.f32.gmra.mxu0 %v277
        %v476 = vpop.f32.mrf.mxu0
        %v477 = vadd.f32 %v217, %v476
        %v478 = vpop.f32.mrf.mxu0
        %479 = vmatprep.mubr.f32.mxu0 0.0
        %480 = vmatmul.mubr.f32.gmra.mxu0 %v280
        %v481 = vpop.f32.mrf.mxu0
        %v482 = vadd.f32 %v217, %v481
        %v483 = vpop.f32.mrf.mxu0
        %484 = vmatprep.mubr.f32.mxu0 0.0
        %485 = vmatmul.mubr.f32.gmra.mxu0 %v283
        %v486 = vpop.f32.mrf.mxu0
        %v487 = vadd.f32 %v217, %v486
        %v488 = vpop.f32.mrf.mxu0
        %489 = vmatprep.mubr.f32.mxu0 0.0
        %490 = vmatmul.mubr.f32.gmra.mxu0 %v286
        %v491 = vpop.f32.mrf.mxu0
        %v492 = vadd.f32 %v217, %v491
        %v493 = vpop.f32.mrf.mxu0
        %494 = vmatprep.mubr.f32.mxu0 0.0
        %495 = vmatmul.mubr.f32.gmra.mxu0 %v289
        %v496 = vpop.f32.mrf.mxu0
        %v497 = vadd.f32 %v217, %v496
        %v498 = vpop.f32.mrf.mxu0
        %499 = vmatprep.mubr.f32.mxu0 0.0
        %500 = vmatmul.mubr.f32.gmra.mxu0 %v292
        %v501 = vpop.f32.mrf.mxu0
        %v502 = vadd.f32 %v217, %v501
        %v503 = vpop.f32.mrf.mxu0
        %504 = vmatprep.mubr.f32.mxu0 0.0
        %505 = vmatmul.mubr.f32.gmra.mxu0 %v295
        %v506 = vpop.f32.mrf.mxu0
        %v507 = vadd.f32 %v217, %v506
        %v508 = vpop.f32.mrf.mxu0
        %509 = vmatprep.mubr.f32.mxu0 0.0
        %510 = vmatmul.mubr.f32.gmra.mxu0 %v298
        %v511 = vpop.f32.mrf.mxu0
        %v512 = vadd.f32 %v217, %v511
        %v513 = vpop.f32.mrf.mxu0
        %514 = vmatprep.mubr.f32.mxu0 0.0
        %515 = vmatmul.mubr.f32.gmra.mxu0 %v301
        %v516 = vpop.f32.mrf.mxu0
        %v517 = vadd.f32 %v217, %v516
        %v518 = vpop.f32.mrf.mxu0
        %519 = vmatprep.mubr.f32.mxu0 0.0
        %520 = vmatmul.mubr.f32.gmra.mxu0 %v304
        %v521 = vpop.f32.mrf.mxu0
        %v522 = vadd.f32 %v217, %v521
        %v523 = vpop.f32.mrf.mxu0
        %524 = vmatprep.mubr.f32.mxu0 0.0
        %525 = vmatmul.mubr.f32.gmra.mxu0 %v307
        %v526 = vpop.f32.mrf.mxu0
        %v527 = vadd.f32 %v217, %v526
        %v528 = vpop.f32.mrf.mxu0
        %529 = vmatprep.mubr.f32.mxu0 0.0
        %530 = vmatmul.mubr.f32.gmra.mxu0 %v310
        %v531 = vpop.f32.mrf.mxu0
        %v532 = vadd.f32 %v217, %v531
        %v533 = vpop.f32.mrf.mxu0
        %534 = vmatprep.mubr.f32.mxu0 0.0
        %535 = vmatmul.mubr.f32.gmra.mxu0 %v313
        %v536 = vpop.f32.mrf.mxu0
        %v537 = vadd.f32 %v217, %v536
        %v538 = vpop.f32.mrf.mxu0
        %539 = vdwg.mxu0
        %vm540 = vcmp.ge.f32.partialorder %v382, 0.0
        %vm541 = vcmp.ge.f32.partialorder %v387, 0.0
        %vm542 = vcmp.ge.f32.partialorder %v392, 0.0
        %vm543 = vcmp.ge.f32.partialorder %v397, 0.0
        %vm544 = vcmp.ge.f32.partialorder %v402, 0.0
        %vm545 = vcmp.ge.f32.partialorder %v407, 0.0
        %vm546 = vcmp.ge.f32.partialorder %v412, 0.0
        %vm547 = vcmp.ge.f32.partialorder %v417, 0.0
        %vm548 = vcmp.ge.f32.partialorder %v422, 0.0
        %vm549 = vcmp.ge.f32.partialorder %v427, 0.0
        %vm550 = vcmp.ge.f32.partialorder %v432, 0.0
        %vm551 = vcmp.ge.f32.partialorder %v437, 0.0
        %vm552 = vcmp.ge.f32.partialorder %v442, 0.0
        %vm553 = vcmp.ge.f32.partialorder %v447, 0.0
        %vm554 = vcmp.ge.f32.partialorder %v452, 0.0
        %vm555 = vcmp.ge.f32.partialorder %v457, 0.0
        %vm556 = vcmp.ge.f32.partialorder %v462, 0.0
        %vm557 = vcmp.ge.f32.partialorder %v467, 0.0
        %vm558 = vcmp.ge.f32.partialorder %v472, 0.0
        %vm559 = vcmp.ge.f32.partialorder %v477, 0.0
        %vm560 = vcmp.ge.f32.partialorder %v482, 0.0
        %vm561 = vcmp.ge.f32.partialorder %v487, 0.0
        %vm562 = vcmp.ge.f32.partialorder %v492, 0.0
        %vm563 = vcmp.ge.f32.partialorder %v497, 0.0
        %vm564 = vcmp.ge.f32.partialorder %v502, 0.0
        %vm565 = vcmp.ge.f32.partialorder %v507, 0.0
        %vm566 = vcmp.ge.f32.partialorder %v512, 0.0
        %vm567 = vcmp.ge.f32.partialorder %v517, 0.0
        %vm568 = vcmp.ge.f32.partialorder %v522, 0.0
        %vm569 = vcmp.ge.f32.partialorder %v527, 0.0
        %vm570 = vcmp.ge.f32.partialorder %v532, 0.0
        %vm571 = vcmp.ge.f32.partialorder %v537, 0.0
        %v572 = vmul.f32 %v382, 0.01
        %v573 = vmul.f32 %v387, 0.01
        %v574 = vmul.f32 %v392, 0.01
        %v575 = vmul.f32 %v397, 0.01
        %v576 = vmul.f32 %v402, 0.01
        %v577 = vmul.f32 %v407, 0.01
        %v578 = vmul.f32 %v412, 0.01
        %v579 = vmul.f32 %v417, 0.01
        %v580 = vmul.f32 %v422, 0.01
        %v581 = vmul.f32 %v427, 0.01
        %v582 = vmul.f32 %v432, 0.01
        %v583 = vmul.f32 %v437, 0.01
        %v584 = vmul.f32 %v442, 0.01
        %v585 = vmul.f32 %v447, 0.01
        %v586 = vmul.f32 %v452, 0.01
        %v587 = vmul.f32 %v457, 0.01
        %v588 = vmul.f32 %v462, 0.01
        %v589 = vmul.f32 %v467, 0.01
        %v590 = vmul.f32 %v472, 0.01
        %v591 = vmul.f32 %v477, 0.01
        %v592 = vmul.f32 %v482, 0.01
        %v593 = vmul.f32 %v487, 0.01
        %v594 = vmul.f32 %v492, 0.01
        %v595 = vmul.f32 %v497, 0.01
        %v596 = vmul.f32 %v502, 0.01
        %v597 = vmul.f32 %v507, 0.01
        %v598 = vmul.f32 %v512, 0.01
        %v599 = vmul.f32 %v517, 0.01
        %v600 = vmul.f32 %v522, 0.01
        %v601 = vmul.f32 %v527, 0.01
        %v602 = vmul.f32 %v532, 0.01
        %v603 = vmul.f32 %v537, 0.01
        %v604 = vsel %vm540, %v382, %v572
        %v605 = vsel %vm541, %v387, %v573
        %v606 = vsel %vm542, %v392, %v574
        %v607 = vsel %vm543, %v397, %v575
        %v608 = vsel %vm544, %v402, %v576
        %v609 = vsel %vm545, %v407, %v577
        %v610 = vsel %vm546, %v412, %v578
        %v611 = vsel %vm547, %v417, %v579
        %v612 = vsel %vm548, %v422, %v580
        %v613 = vsel %vm549, %v427, %v581
        %v614 = vsel %vm550, %v432, %v582
        %v615 = vsel %vm551, %v437, %v583
        %v616 = vsel %vm552, %v442, %v584
        %v617 = vsel %vm553, %v447, %v585
        %v618 = vsel %vm554, %v452, %v586
        %v619 = vsel %vm555, %v457, %v587
        %v620 = vsel %vm556, %v462, %v588
        %v621 = vsel %vm557, %v467, %v589
        %v622 = vsel %vm558, %v472, %v590
        %v623 = vsel %vm559, %v477, %v591
        %v624 = vsel %vm560, %v482, %v592
        %v625 = vsel %vm561, %v487, %v593
        %v626 = vsel %vm562, %v492, %v594
        %v627 = vsel %vm563, %v497, %v595
        %v628 = vsel %vm564, %v502, %v596
        %v629 = vsel %vm565, %v507, %v597
        %v630 = vsel %vm566, %v512, %v598
        %v631 = vsel %vm567, %v517, %v599
        %v632 = vsel %vm568, %v522, %v600
        %v633 = vsel %vm569, %v527, %v601
        %v634 = vsel %vm570, %v532, %v602
        %v635 = vsel %vm571, %v537, %v603
        %v636 = vlaneseq
        %v637 = vshrl.u32 %v636, 7
        %v638 = vsub.s32 0, %v637
        %v639 = vrot.slane %v164, %v638
        %640 = vmatprep.subr.mxu0 0.0
        %641 = vmatpush1.msra.mxu0 %v163
        %642 = vmatprep.subr.mxu0 0.0
        %643 = vmatpush1.msra.mxu0 %v162
        %644 = vmatprep.subr.mxu0 0.0
        %645 = vmatpush1.msra.mxu0 %v161
        %646 = vmatprep.subr.mxu0 0.0
        %647 = vmatpush1.msra.mxu0 %v160
        %648 = vmatprep.subr.mxu0 0.0
        %649 = vmatpush1.msra.mxu0 %v159
        %650 = vmatprep.subr.mxu0 0.0
        %651 = vmatpush1.msra.mxu0 %v158
        %652 = vmatprep.subr.mxu0 0.0
        %653 = vmatpush1.msra.mxu0 %v157
        %654 = vmatprep.subr.mxu0 0.0
        %655 = vmatpush1.msra.mxu0 %v156
        %656 = vmatprep.subr.mxu0 0.0
        %657 = vmatpush1.msra.mxu0 %v155
        %658 = vmatprep.subr.mxu0 0.0
        %659 = vmatpush1.msra.mxu0 %v154
        %660 = vmatprep.subr.mxu0 0.0
        %661 = vmatpush1.msra.mxu0 %v153
        %662 = vmatprep.subr.mxu0 0.0
        %663 = vmatpush1.msra.mxu0 %v152
        %664 = vmatprep.subr.mxu0 0.0
        %665 = vmatpush1.msra.mxu0 %v151
        %666 = vmatprep.subr.mxu0 0.0
        %667 = vmatpush1.msra.mxu0 %v150
        %668 = vmatprep.subr.mxu0 0.0
        %669 = vmatpush1.msra.mxu0 %v149
        %670 = vmatprep.subr.mxu0 0.0
        %671 = vmatpush1.msra.mxu0 %v148
        %672 = vmatprep.subr.mxu0 0.0
        %673 = vmatpush2.msra.mxu0 0.0
        %674 = vmatprep.subr.mxu0 0.0
        %675 = vmatpush2.msra.mxu0 0.0
        %676 = vmatprep.subr.mxu0 0.0
        %677 = vmatpush2.msra.mxu0 0.0
        %678 = vmatprep.subr.mxu0 0.0
        %679 = vmatpush2.msra.mxu0 0.0
        %680 = vmatprep.subr.mxu0 0.0
        %681 = vmatpush2.msra.mxu0 0.0
        %682 = vmatprep.subr.mxu0 0.0
        %683 = vmatpush2.msra.mxu0 0.0
        %684 = vmatprep.subr.mxu0 0.0
        %685 = vmatpush2.msra.mxu0 0.0
        %686 = vmatprep.subr.mxu0 0.0
        %687 = vmatpush2.msra.mxu0 0.0
        %688 = vmatprep.subr.mxu0 0.0
        %689 = vmatpush2.msra.mxu0 0.0
        %690 = vmatprep.subr.mxu0 0.0
        %691 = vmatpush2.msra.mxu0 0.0
        %692 = vmatprep.subr.mxu0 0.0
        %693 = vmatpush2.msra.mxu0 0.0
        %694 = vmatprep.subr.mxu0 0.0
        %695 = vmatpush2.msra.mxu0 0.0
        %696 = vmatprep.subr.mxu0 0.0
        %697 = vmatpush2.msra.mxu0 0.0
        %698 = vmatprep.subr.mxu0 0.0
        %699 = vmatpush2.msra.mxu0 0.0
        %700 = vmatprep.subr.mxu0 0.0
        %701 = vmatpush2.msra.mxu0 0.0
        %702 = vmatprep.subr.mxu0 0.0
        %703 = vmatpush2.msra.mxu0 0.0
        %704 = vmatprep.mubr.f32.mxu0 0.0
        %705 = vmatmul.mubr.f32.gmra.mxu0 %v604
        %v706 = vpop.f32.mrf.mxu0
        %v707 = vadd.f32 %v639, %v706
        %v708 = vpop.f32.mrf.mxu0
        %709 = vmatprep.mubr.f32.mxu0 0.0
        %710 = vmatmul.mubr.f32.gmra.mxu0 %v605
        %v711 = vpop.f32.mrf.mxu0
        %v712 = vadd.f32 %v639, %v711
        %v713 = vpop.f32.mrf.mxu0
        %714 = vmatprep.mubr.f32.mxu0 0.0
        %715 = vmatmul.mubr.f32.gmra.mxu0 %v606
        %v716 = vpop.f32.mrf.mxu0
        %v717 = vadd.f32 %v639, %v716
        %v718 = vpop.f32.mrf.mxu0
        %719 = vmatprep.mubr.f32.mxu0 0.0
        %720 = vmatmul.mubr.f32.gmra.mxu0 %v607
        %v721 = vpop.f32.mrf.mxu0
        %v722 = vadd.f32 %v639, %v721
        %v723 = vpop.f32.mrf.mxu0
        %724 = vmatprep.mubr.f32.mxu0 0.0
        %725 = vmatmul.mubr.f32.gmra.mxu0 %v608
        %v726 = vpop.f32.mrf.mxu0
        %v727 = vadd.f32 %v639, %v726
        %v728 = vpop.f32.mrf.mxu0
        %729 = vmatprep.mubr.f32.mxu0 0.0
        %730 = vmatmul.mubr.f32.gmra.mxu0 %v609
        %v731 = vpop.f32.mrf.mxu0
        %v732 = vadd.f32 %v639, %v731
        %v733 = vpop.f32.mrf.mxu0
        %734 = vmatprep.mubr.f32.mxu0 0.0
        %735 = vmatmul.mubr.f32.gmra.mxu0 %v610
        %v736 = vpop.f32.mrf.mxu0
        %v737 = vadd.f32 %v639, %v736
        %v738 = vpop.f32.mrf.mxu0
        %739 = vmatprep.mubr.f32.mxu0 0.0
        %740 = vmatmul.mubr.f32.gmra.mxu0 %v611
        %v741 = vpop.f32.mrf.mxu0
        %v742 = vadd.f32 %v639, %v741
        %v743 = vpop.f32.mrf.mxu0
        %744 = vmatprep.mubr.f32.mxu0 0.0
        %745 = vmatmul.mubr.f32.gmra.mxu0 %v612
        %v746 = vpop.f32.mrf.mxu0
        %v747 = vadd.f32 %v639, %v746
        %v748 = vpop.f32.mrf.mxu0
        %749 = vmatprep.mubr.f32.mxu0 0.0
        %750 = vmatmul.mubr.f32.gmra.mxu0 %v613
        %v751 = vpop.f32.mrf.mxu0
        %v752 = vadd.f32 %v639, %v751
        %v753 = vpop.f32.mrf.mxu0
        %754 = vmatprep.mubr.f32.mxu0 0.0
        %755 = vmatmul.mubr.f32.gmra.mxu0 %v614
        %v756 = vpop.f32.mrf.mxu0
        %v757 = vadd.f32 %v639, %v756
        %v758 = vpop.f32.mrf.mxu0
        %759 = vmatprep.mubr.f32.mxu0 0.0
        %760 = vmatmul.mubr.f32.gmra.mxu0 %v615
        %v761 = vpop.f32.mrf.mxu0
        %v762 = vadd.f32 %v639, %v761
        %v763 = vpop.f32.mrf.mxu0
        %764 = vmatprep.mubr.f32.mxu0 0.0
        %765 = vmatmul.mubr.f32.gmra.mxu0 %v616
        %v766 = vpop.f32.mrf.mxu0
        %v767 = vadd.f32 %v639, %v766
        %v768 = vpop.f32.mrf.mxu0
        %769 = vmatprep.mubr.f32.mxu0 0.0
        %770 = vmatmul.mubr.f32.gmra.mxu0 %v617
        %v771 = vpop.f32.mrf.mxu0
        %v772 = vadd.f32 %v639, %v771
        %v773 = vpop.f32.mrf.mxu0
        %774 = vmatprep.mubr.f32.mxu0 0.0
        %775 = vmatmul.mubr.f32.gmra.mxu0 %v618
        %v776 = vpop.f32.mrf.mxu0
        %v777 = vadd.f32 %v639, %v776
        %v778 = vpop.f32.mrf.mxu0
        %779 = vmatprep.mubr.f32.mxu0 0.0
        %780 = vmatmul.mubr.f32.gmra.mxu0 %v619
        %v781 = vpop.f32.mrf.mxu0
        %v782 = vadd.f32 %v639, %v781
        %v783 = vpop.f32.mrf.mxu0
        %784 = vmatprep.mubr.f32.mxu0 0.0
        %785 = vmatmul.mubr.f32.gmra.mxu0 %v620
        %v786 = vpop.f32.mrf.mxu0
        %v787 = vadd.f32 %v639, %v786
        %v788 = vpop.f32.mrf.mxu0
        %789 = vmatprep.mubr.f32.mxu0 0.0
        %790 = vmatmul.mubr.f32.gmra.mxu0 %v621
        %v791 = vpop.f32.mrf.mxu0
        %v792 = vadd.f32 %v639, %v791
        %v793 = vpop.f32.mrf.mxu0
        %794 = vmatprep.mubr.f32.mxu0 0.0
        %795 = vmatmul.mubr.f32.gmra.mxu0 %v622
        %v796 = vpop.f32.mrf.mxu0
        %v797 = vadd.f32 %v639, %v796
        %v798 = vpop.f32.mrf.mxu0
        %799 = vmatprep.mubr.f32.mxu0 0.0
        %800 = vmatmul.mubr.f32.gmra.mxu0 %v623
        %v801 = vpop.f32.mrf.mxu0
        %v802 = vadd.f32 %v639, %v801
        %v803 = vpop.f32.mrf.mxu0
        %804 = vmatprep.mubr.f32.mxu0 0.0
        %805 = vmatmul.mubr.f32.gmra.mxu0 %v624
        %v806 = vpop.f32.mrf.mxu0
        %v807 = vadd.f32 %v639, %v806
        %v808 = vpop.f32.mrf.mxu0
        %809 = vmatprep.mubr.f32.mxu0 0.0
        %810 = vmatmul.mubr.f32.gmra.mxu0 %v625
        %v811 = vpop.f32.mrf.mxu0
        %v812 = vadd.f32 %v639, %v811
        %v813 = vpop.f32.mrf.mxu0
        %814 = vmatprep.mubr.f32.mxu0 0.0
        %815 = vmatmul.mubr.f32.gmra.mxu0 %v626
        %v816 = vpop.f32.mrf.mxu0
        %v817 = vadd.f32 %v639, %v816
        %v818 = vpop.f32.mrf.mxu0
        %819 = vmatprep.mubr.f32.mxu0 0.0
        %820 = vmatmul.mubr.f32.gmra.mxu0 %v627
        %v821 = vpop.f32.mrf.mxu0
        %v822 = vadd.f32 %v639, %v821
        %v823 = vpop.f32.mrf.mxu0
        %824 = vmatprep.mubr.f32.mxu0 0.0
        %825 = vmatmul.mubr.f32.gmra.mxu0 %v628
        %v826 = vpop.f32.mrf.mxu0
        %v827 = vadd.f32 %v639, %v826
        %v828 = vpop.f32.mrf.mxu0
        %829 = vmatprep.mubr.f32.mxu0 0.0
        %830 = vmatmul.mubr.f32.gmra.mxu0 %v629
        %v831 = vpop.f32.mrf.mxu0
        %v832 = vadd.f32 %v639, %v831
        %v833 = vpop.f32.mrf.mxu0
        %834 = vmatprep.mubr.f32.mxu0 0.0
        %835 = vmatmul.mubr.f32.gmra.mxu0 %v630
        %v836 = vpop.f32.mrf.mxu0
        %v837 = vadd.f32 %v639, %v836
        %v838 = vpop.f32.mrf.mxu0
        %839 = vmatprep.mubr.f32.mxu0 0.0
        %840 = vmatmul.mubr.f32.gmra.mxu0 %v631
        %v841 = vpop.f32.mrf.mxu0
        %v842 = vadd.f32 %v639, %v841
        %v843 = vpop.f32.mrf.mxu0
        %844 = vmatprep.mubr.f32.mxu0 0.0
        %845 = vmatmul.mubr.f32.gmra.mxu0 %v632
        %v846 = vpop.f32.mrf.mxu0
        %v847 = vadd.f32 %v639, %v846
        %v848 = vpop.f32.mrf.mxu0
        %849 = vmatprep.mubr.f32.mxu0 0.0
        %850 = vmatmul.mubr.f32.gmra.mxu0 %v633
        %v851 = vpop.f32.mrf.mxu0
        %v852 = vadd.f32 %v639, %v851
        %v853 = vpop.f32.mrf.mxu0
        %854 = vmatprep.mubr.f32.mxu0 0.0
        %855 = vmatmul.mubr.f32.gmra.mxu0 %v634
        %v856 = vpop.f32.mrf.mxu0
        %v857 = vadd.f32 %v639, %v856
        %v858 = vpop.f32.mrf.mxu0
        %859 = vmatprep.mubr.f32.mxu0 0.0
        %860 = vmatmul.mubr.f32.gmra.mxu0 %v635
        %v861 = vpop.f32.mrf.mxu0
        %v862 = vadd.f32 %v639, %v861
        %v863 = vpop.f32.mrf.mxu0
        %864 = vdwg.mxu0
        %vm865 = vcmp.ge.f32.partialorder %v707, 0.0
        %vm866 = vcmp.ge.f32.partialorder %v712, 0.0
        %vm867 = vcmp.ge.f32.partialorder %v717, 0.0
        %vm868 = vcmp.ge.f32.partialorder %v722, 0.0
        %vm869 = vcmp.ge.f32.partialorder %v727, 0.0
        %vm870 = vcmp.ge.f32.partialorder %v732, 0.0
        %vm871 = vcmp.ge.f32.partialorder %v737, 0.0
        %vm872 = vcmp.ge.f32.partialorder %v742, 0.0
        %vm873 = vcmp.ge.f32.partialorder %v747, 0.0
        %vm874 = vcmp.ge.f32.partialorder %v752, 0.0
        %vm875 = vcmp.ge.f32.partialorder %v757, 0.0
        %vm876 = vcmp.ge.f32.partialorder %v762, 0.0
        %vm877 = vcmp.ge.f32.partialorder %v767, 0.0
        %vm878 = vcmp.ge.f32.partialorder %v772, 0.0
        %vm879 = vcmp.ge.f32.partialorder %v777, 0.0
        %vm880 = vcmp.ge.f32.partialorder %v782, 0.0
        %vm881 = vcmp.ge.f32.partialorder %v787, 0.0
        %vm882 = vcmp.ge.f32.partialorder %v792, 0.0
        %vm883 = vcmp.ge.f32.partialorder %v797, 0.0
        %vm884 = vcmp.ge.f32.partialorder %v802, 0.0
        %vm885 = vcmp.ge.f32.partialorder %v807, 0.0
        %vm886 = vcmp.ge.f32.partialorder %v812, 0.0
        %vm887 = vcmp.ge.f32.partialorder %v817, 0.0
        %vm888 = vcmp.ge.f32.partialorder %v822, 0.0
        %vm889 = vcmp.ge.f32.partialorder %v827, 0.0
        %vm890 = vcmp.ge.f32.partialorder %v832, 0.0
        %vm891 = vcmp.ge.f32.partialorder %v837, 0.0
        %vm892 = vcmp.ge.f32.partialorder %v842, 0.0
        %vm893 = vcmp.ge.f32.partialorder %v847, 0.0
        %vm894 = vcmp.ge.f32.partialorder %v852, 0.0
        %vm895 = vcmp.ge.f32.partialorder %v857, 0.0
        %vm896 = vcmp.ge.f32.partialorder %v862, 0.0
        %v897 = vmul.f32 %v707, 0.01
        %v898 = vmul.f32 %v712, 0.01
        %v899 = vmul.f32 %v717, 0.01
        %v900 = vmul.f32 %v722, 0.01
        %v901 = vmul.f32 %v727, 0.01
        %v902 = vmul.f32 %v732, 0.01
        %v903 = vmul.f32 %v737, 0.01
        %v904 = vmul.f32 %v742, 0.01
        %v905 = vmul.f32 %v747, 0.01
        %v906 = vmul.f32 %v752, 0.01
        %v907 = vmul.f32 %v757, 0.01
        %v908 = vmul.f32 %v762, 0.01
        %v909 = vmul.f32 %v767, 0.01
        %v910 = vmul.f32 %v772, 0.01
        %v911 = vmul.f32 %v777, 0.01
        %v912 = vmul.f32 %v782, 0.01
        %v913 = vmul.f32 %v787, 0.01
        %v914 = vmul.f32 %v792, 0.01
        %v915 = vmul.f32 %v797, 0.01
        %v916 = vmul.f32 %v802, 0.01
        %v917 = vmul.f32 %v807, 0.01
        %v918 = vmul.f32 %v812, 0.01
        %v919 = vmul.f32 %v817, 0.01
        %v920 = vmul.f32 %v822, 0.01
        %v921 = vmul.f32 %v827, 0.01
        %v922 = vmul.f32 %v832, 0.01
        %v923 = vmul.f32 %v837, 0.01
        %v924 = vmul.f32 %v842, 0.01
        %v925 = vmul.f32 %v847, 0.01
        %v926 = vmul.f32 %v852, 0.01
        %v927 = vmul.f32 %v857, 0.01
        %v928 = vmul.f32 %v862, 0.01
        %v929 = vsel %vm865, %v707, %v897
        %v930 = vsel %vm866, %v712, %v898
        %v931 = vsel %vm867, %v717, %v899
        %v932 = vsel %vm868, %v722, %v900
        %v933 = vsel %vm869, %v727, %v901
        %v934 = vsel %vm870, %v732, %v902
        %v935 = vsel %vm871, %v737, %v903
        %v936 = vsel %vm872, %v742, %v904
        %v937 = vsel %vm873, %v747, %v905
        %v938 = vsel %vm874, %v752, %v906
        %v939 = vsel %vm875, %v757, %v907
        %v940 = vsel %vm876, %v762, %v908
        %v941 = vsel %vm877, %v767, %v909
        %v942 = vsel %vm878, %v772, %v910
        %v943 = vsel %vm879, %v777, %v911
        %v944 = vsel %vm880, %v782, %v912
        %v945 = vsel %vm881, %v787, %v913
        %v946 = vsel %vm882, %v792, %v914
        %v947 = vsel %vm883, %v797, %v915
        %v948 = vsel %vm884, %v802, %v916
        %v949 = vsel %vm885, %v807, %v917
        %v950 = vsel %vm886, %v812, %v918
        %v951 = vsel %vm887, %v817, %v919
        %v952 = vsel %vm888, %v822, %v920
        %v953 = vsel %vm889, %v827, %v921
        %v954 = vsel %vm890, %v832, %v922
        %v955 = vsel %vm891, %v837, %v923
        %v956 = vsel %vm892, %v842, %v924
        %v957 = vsel %vm893, %v847, %v925
        %v958 = vsel %vm894, %v852, %v926
        %v959 = vsel %vm895, %v857, %v927
        %v960 = vsel %vm896, %v862, %v928
        %v961 = vlaneseq
        %v962 = vshrl.u32 %v961, 7
        %v963 = vsub.s32 0, %v962
        %v964 = vrot.slane %v181, %v963
        %965 = vmatprep.subr.mxu0 0.0
        %966 = vmatpush1.msra.mxu0 %v180
        %967 = vmatprep.subr.mxu0 0.0
        %968 = vmatpush1.msra.mxu0 %v179
        %969 = vmatprep.subr.mxu0 0.0
        %970 = vmatpush1.msra.mxu0 %v178
        %971 = vmatprep.subr.mxu0 0.0
        %972 = vmatpush1.msra.mxu0 %v177
        %973 = vmatprep.subr.mxu0 0.0
        %974 = vmatpush1.msra.mxu0 %v176
        %975 = vmatprep.subr.mxu0 0.0
        %976 = vmatpush1.msra.mxu0 %v175
        %977 = vmatprep.subr.mxu0 0.0
        %978 = vmatpush1.msra.mxu0 %v174
        %979 = vmatprep.subr.mxu0 0.0
        %980 = vmatpush1.msra.mxu0 %v173
        %981 = vmatprep.subr.mxu0 0.0
        %982 = vmatpush1.msra.mxu0 %v172
        %983 = vmatprep.subr.mxu0 0.0
        %984 = vmatpush1.msra.mxu0 %v171
        %985 = vmatprep.subr.mxu0 0.0
        %986 = vmatpush1.msra.mxu0 %v170
        %987 = vmatprep.subr.mxu0 0.0
        %988 = vmatpush1.msra.mxu0 %v169
        %989 = vmatprep.subr.mxu0 0.0
        %990 = vmatpush1.msra.mxu0 %v168
        %991 = vmatprep.subr.mxu0 0.0
        %992 = vmatpush1.msra.mxu0 %v167
        %993 = vmatprep.subr.mxu0 0.0
        %994 = vmatpush1.msra.mxu0 %v166
        %995 = vmatprep.subr.mxu0 0.0
        %996 = vmatpush1.msra.mxu0 %v165
        %997 = vmatprep.subr.mxu0 0.0
        %998 = vmatpush2.msra.mxu0 0.0
        %999 = vmatprep.subr.mxu0 0.0
        %1000 = vmatpush2.msra.mxu0 0.0
        %1001 = vmatprep.subr.mxu0 0.0
        %1002 = vmatpush2.msra.mxu0 0.0
        %1003 = vmatprep.subr.mxu0 0.0
        %1004 = vmatpush2.msra.mxu0 0.0
        %1005 = vmatprep.subr.mxu0 0.0
        %1006 = vmatpush2.msra.mxu0 0.0
        %1007 = vmatprep.subr.mxu0 0.0
        %1008 = vmatpush2.msra.mxu0 0.0
        %1009 = vmatprep.subr.mxu0 0.0
        %1010 = vmatpush2.msra.mxu0 0.0
        %1011 = vmatprep.subr.mxu0 0.0
        %1012 = vmatpush2.msra.mxu0 0.0
        %1013 = vmatprep.subr.mxu0 0.0
        %1014 = vmatpush2.msra.mxu0 0.0
        %1015 = vmatprep.subr.mxu0 0.0
        %1016 = vmatpush2.msra.mxu0 0.0
        %1017 = vmatprep.subr.mxu0 0.0
        %1018 = vmatpush2.msra.mxu0 0.0
        %1019 = vmatprep.subr.mxu0 0.0
        %1020 = vmatpush2.msra.mxu0 0.0
        %1021 = vmatprep.subr.mxu0 0.0
        %1022 = vmatpush2.msra.mxu0 0.0
        %1023 = vmatprep.subr.mxu0 0.0
        %1024 = vmatpush2.msra.mxu0 0.0
        %1025 = vmatprep.subr.mxu0 0.0
        %1026 = vmatpush2.msra.mxu0 0.0
        %1027 = vmatprep.subr.mxu0 0.0
        %1028 = vmatpush2.msra.mxu0 0.0
        %1029 = vmatprep.mubr.f32.mxu0 0.0
        %1030 = vmatmul.mubr.f32.gmra.mxu0 %v929
        %v1031 = vpop.f32.mrf.mxu0
        %v1032 = vadd.f32 %v964, %v1031
        %v1033 = vpop.f32.mrf.mxu0
        %1034 = vmatprep.mubr.f32.mxu0 0.0
        %1035 = vmatmul.mubr.f32.gmra.mxu0 %v930
        %v1036 = vpop.f32.mrf.mxu0
        %v1037 = vadd.f32 %v964, %v1036
        %v1038 = vpop.f32.mrf.mxu0
        %1039 = vmatprep.mubr.f32.mxu0 0.0
        %1040 = vmatmul.mubr.f32.gmra.mxu0 %v931
        %v1041 = vpop.f32.mrf.mxu0
        %v1042 = vadd.f32 %v964, %v1041
        %v1043 = vpop.f32.mrf.mxu0
        %1044 = vmatprep.mubr.f32.mxu0 0.0
        %1045 = vmatmul.mubr.f32.gmra.mxu0 %v932
        %v1046 = vpop.f32.mrf.mxu0
        %v1047 = vadd.f32 %v964, %v1046
        %v1048 = vpop.f32.mrf.mxu0
        %1049 = vmatprep.mubr.f32.mxu0 0.0
        %1050 = vmatmul.mubr.f32.gmra.mxu0 %v933
        %v1051 = vpop.f32.mrf.mxu0
        %v1052 = vadd.f32 %v964, %v1051
        %v1053 = vpop.f32.mrf.mxu0
        %1054 = vmatprep.mubr.f32.mxu0 0.0
        %1055 = vmatmul.mubr.f32.gmra.mxu0 %v934
        %v1056 = vpop.f32.mrf.mxu0
        %v1057 = vadd.f32 %v964, %v1056
        %v1058 = vpop.f32.mrf.mxu0
        %1059 = vmatprep.mubr.f32.mxu0 0.0
        %1060 = vmatmul.mubr.f32.gmra.mxu0 %v935
        %v1061 = vpop.f32.mrf.mxu0
        %v1062 = vadd.f32 %v964, %v1061
        %v1063 = vpop.f32.mrf.mxu0
        %1064 = vmatprep.mubr.f32.mxu0 0.0
        %1065 = vmatmul.mubr.f32.gmra.mxu0 %v936
        %v1066 = vpop.f32.mrf.mxu0
        %v1067 = vadd.f32 %v964, %v1066
        %v1068 = vpop.f32.mrf.mxu0
        %1069 = vmatprep.mubr.f32.mxu0 0.0
        %1070 = vmatmul.mubr.f32.gmra.mxu0 %v937
        %v1071 = vpop.f32.mrf.mxu0
        %v1072 = vadd.f32 %v964, %v1071
        %v1073 = vpop.f32.mrf.mxu0
        %1074 = vmatprep.mubr.f32.mxu0 0.0
        %1075 = vmatmul.mubr.f32.gmra.mxu0 %v938
        %v1076 = vpop.f32.mrf.mxu0
        %v1077 = vadd.f32 %v964, %v1076
        %v1078 = vpop.f32.mrf.mxu0
        %1079 = vmatprep.mubr.f32.mxu0 0.0
        %1080 = vmatmul.mubr.f32.gmra.mxu0 %v939
        %v1081 = vpop.f32.mrf.mxu0
        %v1082 = vadd.f32 %v964, %v1081
        %v1083 = vpop.f32.mrf.mxu0
        %1084 = vmatprep.mubr.f32.mxu0 0.0
        %1085 = vmatmul.mubr.f32.gmra.mxu0 %v940
        %v1086 = vpop.f32.mrf.mxu0
        %v1087 = vadd.f32 %v964, %v1086
        %v1088 = vpop.f32.mrf.mxu0
        %1089 = vmatprep.mubr.f32.mxu0 0.0
        %1090 = vmatmul.mubr.f32.gmra.mxu0 %v941
        %v1091 = vpop.f32.mrf.mxu0
        %v1092 = vadd.f32 %v964, %v1091
        %v1093 = vpop.f32.mrf.mxu0
        %1094 = vmatprep.mubr.f32.mxu0 0.0
        %1095 = vmatmul.mubr.f32.gmra.mxu0 %v942
        %v1096 = vpop.f32.mrf.mxu0
        %v1097 = vadd.f32 %v964, %v1096
        %v1098 = vpop.f32.mrf.mxu0
        %1099 = vmatprep.mubr.f32.mxu0 0.0
        %1100 = vmatmul.mubr.f32.gmra.mxu0 %v943
        %v1101 = vpop.f32.mrf.mxu0
        %v1102 = vadd.f32 %v964, %v1101
        %v1103 = vpop.f32.mrf.mxu0
        %1104 = vmatprep.mubr.f32.mxu0 0.0
        %1105 = vmatmul.mubr.f32.gmra.mxu0 %v944
        %v1106 = vpop.f32.mrf.mxu0
        %v1107 = vadd.f32 %v964, %v1106
        %v1108 = vpop.f32.mrf.mxu0
        %1109 = vmatprep.mubr.f32.mxu0 0.0
        %1110 = vmatmul.mubr.f32.gmra.mxu0 %v945
        %v1111 = vpop.f32.mrf.mxu0
        %v1112 = vadd.f32 %v964, %v1111
        %v1113 = vpop.f32.mrf.mxu0
        %1114 = vmatprep.mubr.f32.mxu0 0.0
        %1115 = vmatmul.mubr.f32.gmra.mxu0 %v946
        %v1116 = vpop.f32.mrf.mxu0
        %v1117 = vadd.f32 %v964, %v1116
        %v1118 = vpop.f32.mrf.mxu0
        %1119 = vmatprep.mubr.f32.mxu0 0.0
        %1120 = vmatmul.mubr.f32.gmra.mxu0 %v947
        %v1121 = vpop.f32.mrf.mxu0
        %v1122 = vadd.f32 %v964, %v1121
        %v1123 = vpop.f32.mrf.mxu0
        %1124 = vmatprep.mubr.f32.mxu0 0.0
        %1125 = vmatmul.mubr.f32.gmra.mxu0 %v948
        %v1126 = vpop.f32.mrf.mxu0
        %v1127 = vadd.f32 %v964, %v1126
        %v1128 = vpop.f32.mrf.mxu0
        %1129 = vmatprep.mubr.f32.mxu0 0.0
        %1130 = vmatmul.mubr.f32.gmra.mxu0 %v949
        %v1131 = vpop.f32.mrf.mxu0
        %v1132 = vadd.f32 %v964, %v1131
        %v1133 = vpop.f32.mrf.mxu0
        %1134 = vmatprep.mubr.f32.mxu0 0.0
        %1135 = vmatmul.mubr.f32.gmra.mxu0 %v950
        %v1136 = vpop.f32.mrf.mxu0
        %v1137 = vadd.f32 %v964, %v1136
        %v1138 = vpop.f32.mrf.mxu0
        %1139 = vmatprep.mubr.f32.mxu0 0.0
        %1140 = vmatmul.mubr.f32.gmra.mxu0 %v951
        %v1141 = vpop.f32.mrf.mxu0
        %v1142 = vadd.f32 %v964, %v1141
        %v1143 = vpop.f32.mrf.mxu0
        %1144 = vmatprep.mubr.f32.mxu0 0.0
        %1145 = vmatmul.mubr.f32.gmra.mxu0 %v952
        %v1146 = vpop.f32.mrf.mxu0
        %v1147 = vadd.f32 %v964, %v1146
        %v1148 = vpop.f32.mrf.mxu0
        %1149 = vmatprep.mubr.f32.mxu0 0.0
        %1150 = vmatmul.mubr.f32.gmra.mxu0 %v953
        %v1151 = vpop.f32.mrf.mxu0
        %v1152 = vadd.f32 %v964, %v1151
        %v1153 = vpop.f32.mrf.mxu0
        %1154 = vmatprep.mubr.f32.mxu0 0.0
        %1155 = vmatmul.mubr.f32.gmra.mxu0 %v954
        %v1156 = vpop.f32.mrf.mxu0
        %v1157 = vadd.f32 %v964, %v1156
        %v1158 = vpop.f32.mrf.mxu0
        %1159 = vmatprep.mubr.f32.mxu0 0.0
        %1160 = vmatmul.mubr.f32.gmra.mxu0 %v955
        %v1161 = vpop.f32.mrf.mxu0
        %v1162 = vadd.f32 %v964, %v1161
        %v1163 = vpop.f32.mrf.mxu0
        %1164 = vmatprep.mubr.f32.mxu0 0.0
        %1165 = vmatmul.mubr.f32.gmra.mxu0 %v956
        %v1166 = vpop.f32.mrf.mxu0
        %v1167 = vadd.f32 %v964, %v1166
        %v1168 = vpop.f32.mrf.mxu0
        %1169 = vmatprep.mubr.f32.mxu0 0.0
        %1170 = vmatmul.mubr.f32.gmra.mxu0 %v957
        %v1171 = vpop.f32.mrf.mxu0
        %v1172 = vadd.f32 %v964, %v1171
        %v1173 = vpop.f32.mrf.mxu0
        %1174 = vmatprep.mubr.f32.mxu0 0.0
        %1175 = vmatmul.mubr.f32.gmra.mxu0 %v958
        %v1176 = vpop.f32.mrf.mxu0
        %v1177 = vadd.f32 %v964, %v1176
        %v1178 = vpop.f32.mrf.mxu0
        %1179 = vmatprep.mubr.f32.mxu0 0.0
        %1180 = vmatmul.mubr.f32.gmra.mxu0 %v959
        %v1181 = vpop.f32.mrf.mxu0
        %v1182 = vadd.f32 %v964, %v1181
        %v1183 = vpop.f32.mrf.mxu0
        %1184 = vmatprep.mubr.f32.mxu0 0.0
        %1185 = vmatmul.mubr.f32.gmra.mxu0 %v960
        %v1186 = vpop.f32.mrf.mxu0
        %v1187 = vadd.f32 %v964, %v1186
        %v1188 = vpop.f32.mrf.mxu0
        %1189 = vdwg.mxu0
        %1190 = vst [vmem:[%s137] sm:$0xff] %v1032
        %1191 = vst [vmem:[%s137 + $0x8] sm:$0xff] %v1037
        %1192 = vst [vmem:[%s137 + $0x10] sm:$0xff] %v1042
        %1193 = vst [vmem:[%s137 + $0x18] sm:$0xff] %v1047
        %1194 = vst [vmem:[%s137 + $0x20] sm:$0xff] %v1052
        %1195 = vst [vmem:[%s137 + $0x28] sm:$0xff] %v1057
        %1196 = vst [vmem:[%s137 + $0x30] sm:$0xff] %v1062
        %1197 = vst [vmem:[%s137 + $0x38] sm:$0xff] %v1067
        %1198 = vst [vmem:[%s137 + $0x40] sm:$0xff] %v1072
        %1199 = vst [vmem:[%s137 + $0x48] sm:$0xff] %v1077
        %1200 = vst [vmem:[%s137 + $0x50] sm:$0xff] %v1082
        %1201 = vst [vmem:[%s137 + $0x58] sm:$0xff] %v1087
        %1202 = vst [vmem:[%s137 + $0x60] sm:$0xff] %v1092
        %1203 = vst [vmem:[%s137 + $0x68] sm:$0xff] %v1097
        %1204 = vst [vmem:[%s137 + $0x70] sm:$0xff] %v1102
        %1205 = vst [vmem:[%s137 + $0x78] sm:$0xff] %v1107
        %1206 = vst [vmem:[%s137 + $0x80] sm:$0xff] %v1112
        %1207 = vst [vmem:[%s137 + $0x88] sm:$0xff] %v1117
        %1208 = vst [vmem:[%s137 + $0x90] sm:$0xff] %v1122
        %1209 = vst [vmem:[%s137 + $0x98] sm:$0xff] %v1127
        %1210 = vst [vmem:[%s137 + $0xa0] sm:$0xff] %v1132
        %1211 = vst [vmem:[%s137 + $0xa8] sm:$0xff] %v1137
        %1212 = vst [vmem:[%s137 + $0xb0] sm:$0xff] %v1142
        %1213 = vst [vmem:[%s137 + $0xb8] sm:$0xff] %v1147
        %1214 = vst [vmem:[%s137 + $0xc0] sm:$0xff] %v1152
        %1215 = vst [vmem:[%s137 + $0xc8] sm:$0xff] %v1157
        %1216 = vst [vmem:[%s137 + $0xd0] sm:$0xff] %v1162
        %1217 = vst [vmem:[%s137 + $0xd8] sm:$0xff] %v1167
        %1218 = vst [vmem:[%s137 + $0xe0] sm:$0xff] %v1172
        %1219 = vst [vmem:[%s137 + $0xe8] sm:$0xff] %v1177
        %1220 = vst [vmem:[%s137 + $0xf0] sm:$0xff] %v1182
        %1221 = vst [vmem:[%s137 + $0xf8] sm:$0xff] %v1187
        %s1222 = sand.u32 %s71, 1
        %s1223 = scalar_lea.sflag [#allocation3], %s1222
        %s1224 = sand.u32 %s71, 1
        %s1225 = smul.addr %s1224, 256
        %s1226 = scalar_lea.vmem [#allocation2], %s1225
        // Predicated region
        $region29: #{tpu_custom_call.1} parent=27 // pred_check
          %p1227 = pneg %p81
        $region30: #{tpu_custom_call.1} parent=27 // pred_check_branch
          %1229 = sbr.rel (%p1227) target = $region32
        $region31: #{tpu_custom_call.1} parent=27 // pred_region
          %s1230 = smul.u32 32, %s16
          %s1232 = ssub.s32 4096, 4096
          %1233 = vsyncadd %s1223, %s1232
          %s1234 = smul.addr %s1230, 128
          %s1235 = scalar_lea.hbm %s2, %s1234
          %s1236 = sshll.u32 %s1226, 4
          %s1237 = int_to_ptr.vmem [resolvable:$true] %s1236
          %1242 = dma.vmem_to_hbm [thread:$0]  %s1237, 4096, %s1235, %s1223, 128, 128, 8
        $region32: #{tpu_custom_call.1} parent=27 // pred_fallthru
          _
      $region28: #{tpu_custom_call.1} parent=5 // pred_fallthru
        _
      %p1243 = scmp.le.s32.totalorder 2, %s11
      // Predicated region
      $region33: #{tpu_custom_call.1} parent=5 // pred_check
        %p1244 = pneg %p1243
      $region34: #{tpu_custom_call.1} parent=5 // pred_check_branch
        %1246 = sbr.rel (%p1244) target = $region36
      $region35: #{tpu_custom_call.1} parent=5 // pred_region
        %s1247 = ssub.s32 %s11, 2
        // Predicated region
        $region37: #{tpu_custom_call.1} parent=35 // pred_check
          %p1248 = pneg %p87
        $region38: #{tpu_custom_call.1} parent=35 // pred_check_branch
          %1250 = sbr.rel (%p1248) target = $region40
        $region39: #{tpu_custom_call.1} parent=35 // pred_region
          %s1251 = sand.u32 %s72, 1
          %s1252 = scalar_lea.sflag [#allocation3], %s1251
          %s1253 = sand.u32 %s72, 1
          %s1254 = smul.addr %s1253, 256
          %s1255 = scalar_lea.vmem [#allocation2], %s1254
          %1256 = dma.done %s1252, 4096
        $region40: #{tpu_custom_call.1} parent=35 // pred_fallthru
          _
      $region36: #{tpu_custom_call.1} parent=5 // pred_fallthru
        _
    $region6: #{tpu_custom_call.1} parent=1 // loop_footer
      %s15 = sadd.s32 1, %s11
    $region7: #{tpu_custom_call.1} parent=1 // loop_footer_branch
      %10 = sbr.rel target = $region3
    $region8: #{tpu_custom_call.1} parent=1 // loop_exit
      _
    %1257 = vsyncpa [#allocation3], 1
    %s1258 = scalar_lea.sflag [#allocation3], 1
    %1259 = vsyncpa %s1258, 1

</llo_original>
